<compile_context>
chip_gen: v5e
topology: v5e:2x2
jax: 0.10.0
libtpu: 0.0.40
codegen_flags: <defaults>
</compile_context>

<pallas_src>
import functools

import jax
import jax.numpy as jnp
from jax.experimental import pallas as pl
from jax.experimental.pallas import tpu as pltpu


def _round_up(n: int, m: int) -> int:
    return (n + m - 1) // m * m


def _cdiv(a: int, b: int) -> int:
    return -(-a // b)


# ------------------------------------------------------------------ kernel ---
def encoder_kernel(
    x_ref,
    w1_ref, b1_ref, w2_ref, b2_ref,      # shared trunk (encoder)
    wh1_ref, bh1_ref, wh2_ref, bh2_ref,  # fused mu|logvar heads
    out_ref,                             # [block_b, 2*latent] = [mu | logvar]
):
    cdt = w1_ref.dtype  # keep bf16 params on the fast MXU path between layers

    # trunk: Linear -> ReLU -> Linear -> ReLU
    h = jnp.dot(x_ref[...], w1_ref[...], preferred_element_type=jnp.float32)
    h = jnp.maximum(h + b1_ref[...], 0.0).astype(cdt)
    h = jnp.dot(h, w2_ref[...], preferred_element_type=jnp.float32)
    h = jnp.maximum(h + b2_ref[...], 0.0).astype(cdt)

    # fused heads: one [h, 2h] matmul + ReLU, then block-diagonal [2h, 2l]
    # matmul -> single lane-dense output slab [mu | logvar].
    hh = jnp.dot(h, wh1_ref[...], preferred_element_type=jnp.float32)
    hh = jnp.maximum(hh + bh1_ref[...], 0.0).astype(cdt)
    out = jnp.dot(hh, wh2_ref[...], preferred_element_type=jnp.float32) + bh2_ref[...]
    out_ref[...] = out.astype(out_ref.dtype)


# ----------------------------------------------------------------- wrapper ---
@functools.partial(jax.jit, static_argnames=("block_b",))
def encoder_forward(x, params, *, block_b=512):
    """Run the fused Encoder forward. x: [B, input_dim] -> (mu, logvar)."""
    B, input_dim = x.shape
    hidden_dim = params["w1"].shape[1]
    latent_dim = params["wm2"].shape[1]
    wdtype = params["wm2"].dtype

    # ---- pack the two heads -------------------------------------------------
    # first layers side-by-side: [hidden, 2*hidden]
    wh1 = jnp.concatenate([params["wm1"], params["wl1"]], axis=1)
    bh1 = jnp.concatenate([params["bm1"], params["bl1"]], axis=1)
    # second layers block-diagonal: [2*hidden, 2*latent]
    z = jnp.zeros((hidden_dim, latent_dim), wdtype)
    wh2 = jnp.concatenate(
        [jnp.concatenate([params["wm2"], z], axis=1),
         jnp.concatenate([z, params["wl2"]], axis=1)],
        axis=0,
    )
    bh2 = jnp.concatenate([params["bm2"], params["bl2"]], axis=1)

    # ---- batch tiling: balanced tiles, minimal padding, 8-row aligned --------
    B8 = _round_up(B, 8)
    num_tiles = max(1, _cdiv(B8, block_b))
    tile = _round_up(_cdiv(B8, num_tiles), 8)
    Bp = tile * num_tiles
    if Bp != B:
        x = jnp.pad(x, ((0, Bp - B), (0, 0)))
    grid = (num_tiles,)

    def full_spec(arr):
        return pl.BlockSpec(arr.shape, lambda i: (0,) * arr.ndim)

    param_args = [params["w1"], params["b1"], params["w2"], params["b2"],
                  wh1, bh1, wh2, bh2]

    in_specs = [pl.BlockSpec((tile, input_dim), lambda i: (i, 0))] + [
        full_spec(p) for p in param_args
    ]
    out_specs = pl.BlockSpec((tile, 2 * latent_dim), lambda i: (i, 0))

    out = pl.pallas_call(
        encoder_kernel,
        out_shape=jax.ShapeDtypeStruct((Bp, 2 * latent_dim), x.dtype),
        grid_spec=pltpu.PrefetchScalarGridSpec(
            num_scalar_prefetch=0,
            grid=grid,
            in_specs=in_specs,
            out_specs=out_specs,
        ),
        compiler_params=pltpu.CompilerParams(
            dimension_semantics=("parallel",),
        ),
    )(x, *param_args)

    mu = out[:B, :latent_dim]
    logvar = out[:B, latent_dim:]
    return mu, logvar


# ---------------------------------------------------------------- param init -
def init_encoder_params(key, input_dim, hidden_dim, latent_dim, dtype=jnp.float32):
    """PyTorch-style init: U(-1/sqrt(fan_in), 1/sqrt(fan_in)).

    Weights stored as [in_features, out_features] (transposed vs torch)."""
    def linear(key, fan_in, fan_out):
        kw, kb = jax.random.split(key)
        bound = 1.0 / jnp.sqrt(fan_in)
        w = jax.random.uniform(kw, (fan_in, fan_out), dtype, -bound, bound)
        b = jax.random.uniform(kb, (1, fan_out), dtype, -bound, bound)
        return w, b

    keys = jax.random.split(key, 6)
    w1, b1 = linear(keys[0], input_dim, hidden_dim)
    w2, b2 = linear(keys[1], hidden_dim, hidden_dim)
    wm1, bm1 = linear(keys[2], hidden_dim, hidden_dim)
    wm2, bm2 = linear(keys[3], hidden_dim, latent_dim)
    wl1, bl1 = linear(keys[4], hidden_dim, hidden_dim)
    wl2, bl2 = linear(keys[5], hidden_dim, latent_dim)
    return dict(w1=w1, b1=b1, w2=w2, b2=b2,
                wm1=wm1, bm1=bm1, wm2=wm2, bm2=bm2,
                wl1=wl1, bl1=bl1, wl2=wl2, bl2=bl2)


# ------------------------------------------------------------ JAX reference --
def encoder_reference(x, p):
    relu = lambda v: jnp.maximum(v, 0.0)
    h = relu(x @ p["w1"] + p["b1"])
    h = relu(h @ p["w2"] + p["b2"])
    mu = relu(h @ p["wm1"] + p["bm1"]) @ p["wm2"] + p["bm2"]
    logvar = relu(h @ p["wl1"] + p["bl1"]) @ p["wl2"] + p["bl2"]
    return mu, logvar


# -------------------------------------------------------------------- main ---
if __name__ == "__main__":
    B, INPUT_DIM, HIDDEN_DIM, LATENT_DIM = 16, 16, 32, 8

    key = jax.random.PRNGKey(0)
    kx, kp = jax.random.split(key)
    x = jax.random.normal(kx, (B, INPUT_DIM), dtype=jnp.float32)
    params = init_encoder_params(kp, INPUT_DIM, HIDDEN_DIM, LATENT_DIM)

    mu, logvar = encoder_forward(x, params)
    jax.block_until_ready((mu, logvar))

    mu_ref, logvar_ref = encoder_reference(x, params)
    assert mu.shape == (B, LATENT_DIM) and logvar.shape == (B, LATENT_DIM)
    assert jnp.allclose(mu, mu_ref, atol=1e-5, rtol=1e-5)
    assert jnp.allclose(logvar, logvar_ref, atol=1e-5, rtol=1e-5)

    # odd (non 8-multiple) batch to exercise the padded-tile path
    B2 = 13
    x2 = jax.random.normal(jax.random.PRNGKey(1), (B2, INPUT_DIM), jnp.float32)
    mu2, logvar2 = encoder_forward(x2, params)
    jax.block_until_ready((mu2, logvar2))
    mu2_ref, logvar2_ref = encoder_reference(x2, params)
    assert mu2.shape == (B2, LATENT_DIM) and logvar2.shape == (B2, LATENT_DIM)
    assert jnp.allclose(mu2, mu2_ref, atol=1e-5, rtol=1e-5)
    assert jnp.allclose(logvar2, logvar2_ref, atol=1e-5, rtol=1e-5)

    print("KERNEL_OK")
</pallas_src>

<mosaic_0001>
module attributes {stable_mosaic.version = 11 : i64} {
  func.func @encoder_kernel(%arg0: i32, %arg1: memref<16x16xf32, #tpu.memory_space<vmem>>, %arg2: memref<16x32xf32, #tpu.memory_space<vmem>>, %arg3: memref<1x32xf32, #tpu.memory_space<vmem>>, %arg4: memref<32x32xf32, #tpu.memory_space<vmem>>, %arg5: memref<1x32xf32, #tpu.memory_space<vmem>>, %arg6: memref<32x64xf32, #tpu.memory_space<vmem>>, %arg7: memref<1x64xf32, #tpu.memory_space<vmem>>, %arg8: memref<64x16xf32, #tpu.memory_space<vmem>>, %arg9: memref<1x16xf32, #tpu.memory_space<vmem>>, %arg10: memref<16x16xf32, #tpu.memory_space<vmem>>) attributes {dimension_semantics = [#tpu.dimension_semantics<parallel>], iteration_bounds = array<i64: 1>, scalar_prefetch = 0 : i64, scratch_operands = 0 : i64, tpu.core_type = #tpu.core_type<tc>, window_params = [{transform_indices = @transform_0, window_bounds = array<i64: 16, 16>}, {pipeline_mode = #tpu.pipeline_mode<synchronous>, transform_indices = @transform_1, window_bounds = array<i64: 16, 32>}, {pipeline_mode = #tpu.pipeline_mode<synchronous>, transform_indices = @transform_2, window_bounds = array<i64: 1, 32>}, {pipeline_mode = #tpu.pipeline_mode<synchronous>, transform_indices = @transform_3, window_bounds = array<i64: 32, 32>}, {pipeline_mode = #tpu.pipeline_mode<synchronous>, transform_indices = @transform_4, window_bounds = array<i64: 1, 32>}, {pipeline_mode = #tpu.pipeline_mode<synchronous>, transform_indices = @transform_5, window_bounds = array<i64: 32, 64>}, {pipeline_mode = #tpu.pipeline_mode<synchronous>, transform_indices = @transform_6, window_bounds = array<i64: 1, 64>}, {pipeline_mode = #tpu.pipeline_mode<synchronous>, transform_indices = @transform_7, window_bounds = array<i64: 64, 16>}, {pipeline_mode = #tpu.pipeline_mode<synchronous>, transform_indices = @transform_8, window_bounds = array<i64: 1, 16>}, {transform_indices = @transform_9, window_bounds = array<i64: 16, 16>}]} {
    %c0 = arith.constant 0 : index
    %c0_0 = arith.constant 0 : index
    %0 = vector.load %arg1[%c0, %c0_0] : memref<16x16xf32, #tpu.memory_space<vmem>>, vector<16x16xf32>
    %c0_1 = arith.constant 0 : index
    %c0_2 = arith.constant 0 : index
    %1 = vector.load %arg2[%c0_1, %c0_2] : memref<16x32xf32, #tpu.memory_space<vmem>>, vector<16x32xf32>
    %cst = arith.constant dense<0.000000e+00> : vector<16x32xf32>
    %2 = tpu.matmul %0, %1, %cst {dimension_numbers = #tpu.dot_dimension_numbers<[1], [0], [0], [1], [0, 0, 1, 1], [], []>} : vector<16x16xf32>, vector<16x32xf32>, vector<16x32xf32> -> vector<16x32xf32>
    %c0_3 = arith.constant 0 : index
    %c0_4 = arith.constant 0 : index
    %3 = vector.load %arg3[%c0_3, %c0_4] : memref<1x32xf32, #tpu.memory_space<vmem>>, vector<1x32xf32>
    %4 = vector.broadcast %3 : vector<1x32xf32> to vector<16x32xf32>
    %5 = arith.addf %2, %4 : vector<16x32xf32>
    %cst_5 = arith.constant 0.000000e+00 : f32
    %6 = vector.broadcast %cst_5 : f32 to vector<16x32xf32>
    %7 = arith.maximumf %5, %6 : vector<16x32xf32>
    %c0_6 = arith.constant 0 : index
    %c0_7 = arith.constant 0 : index
    %8 = vector.load %arg4[%c0_6, %c0_7] : memref<32x32xf32, #tpu.memory_space<vmem>>, vector<32x32xf32>
    %cst_8 = arith.constant dense<0.000000e+00> : vector<16x32xf32>
    %9 = tpu.matmul %7, %8, %cst_8 {dimension_numbers = #tpu.dot_dimension_numbers<[1], [0], [0], [1], [0, 0, 1, 1], [], []>} : vector<16x32xf32>, vector<32x32xf32>, vector<16x32xf32> -> vector<16x32xf32>
    %c0_9 = arith.constant 0 : index
    %c0_10 = arith.constant 0 : index
    %10 = vector.load %arg5[%c0_9, %c0_10] : memref<1x32xf32, #tpu.memory_space<vmem>>, vector<1x32xf32>
    %11 = vector.broadcast %10 : vector<1x32xf32> to vector<16x32xf32>
    %12 = arith.addf %9, %11 : vector<16x32xf32>
    %cst_11 = arith.constant 0.000000e+00 : f32
    %13 = vector.broadcast %cst_11 : f32 to vector<16x32xf32>
    %14 = arith.maximumf %12, %13 : vector<16x32xf32>
    %c0_12 = arith.constant 0 : index
    %c0_13 = arith.constant 0 : index
    %15 = vector.load %arg6[%c0_12, %c0_13] : memref<32x64xf32, #tpu.memory_space<vmem>>, vector<32x64xf32>
    %cst_14 = arith.constant dense<0.000000e+00> : vector<16x64xf32>
    %16 = tpu.matmul %14, %15, %cst_14 {dimension_numbers = #tpu.dot_dimension_numbers<[1], [0], [0], [1], [0, 0, 1, 1], [], []>} : vector<16x32xf32>, vector<32x64xf32>, vector<16x64xf32> -> vector<16x64xf32>
    %c0_15 = arith.constant 0 : index
    %c0_16 = arith.constant 0 : index
    %17 = vector.load %arg7[%c0_15, %c0_16] : memref<1x64xf32, #tpu.memory_space<vmem>>, vector<1x64xf32>
    %18 = vector.broadcast %17 : vector<1x64xf32> to vector<16x64xf32>
    %19 = arith.addf %16, %18 : vector<16x64xf32>
    %cst_17 = arith.constant 0.000000e+00 : f32
    %20 = vector.broadcast %cst_17 : f32 to vector<16x64xf32>
    %21 = arith.maximumf %19, %20 : vector<16x64xf32>
    %c0_18 = arith.constant 0 : index
    %c0_19 = arith.constant 0 : index
    %22 = vector.load %arg8[%c0_18, %c0_19] : memref<64x16xf32, #tpu.memory_space<vmem>>, vector<64x16xf32>
    %cst_20 = arith.constant dense<0.000000e+00> : vector<16x16xf32>
    %23 = tpu.matmul %21, %22, %cst_20 {dimension_numbers = #tpu.dot_dimension_numbers<[1], [0], [0], [1], [0, 0, 1, 1], [], []>} : vector<16x64xf32>, vector<64x16xf32>, vector<16x16xf32> -> vector<16x16xf32>
    %c0_21 = arith.constant 0 : index
    %c0_22 = arith.constant 0 : index
    %24 = vector.load %arg9[%c0_21, %c0_22] : memref<1x16xf32, #tpu.memory_space<vmem>>, vector<1x16xf32>
    %25 = vector.broadcast %24 : vector<1x16xf32> to vector<16x16xf32>
    %26 = arith.addf %23, %25 : vector<16x16xf32>
    %c0_23 = arith.constant 0 : index
    %c0_24 = arith.constant 0 : index
    %27 = vector.load %arg10[%c0_23, %c0_24] : memref<16x16xf32, #tpu.memory_space<vmem>>, vector<16x16xf32>
    tpu.vector_store %arg10[%c0_23, %c0_24], %26 {strides = array<i32>} : memref<16x16xf32, #tpu.memory_space<vmem>>, vector<16x16xf32>,
    return
  }
  func.func @transform_0(%arg0: i32) -> (i32, i32) {
    %c0_i32 = arith.constant 0 : i32
    %c0_i32_0 = arith.constant 0 : i32
    return %arg0, %c0_i32 : i32, i32
  }
  func.func @transform_1(%arg0: i32) -> (i32, i32) {
    %c0_i32 = arith.constant 0 : i32
    %c0_i32_0 = arith.constant 0 : i32
    %c0_i32_1 = arith.constant 0 : i32
    return %c0_i32, %c0_i32_0 : i32, i32
  }
  func.func @transform_2(%arg0: i32) -> (i32, i32) {
    %c0_i32 = arith.constant 0 : i32
    %c0_i32_0 = arith.constant 0 : i32
    %c0_i32_1 = arith.constant 0 : i32
    return %c0_i32, %c0_i32_0 : i32, i32
  }
  func.func @transform_3(%arg0: i32) -> (i32, i32) {
    %c0_i32 = arith.constant 0 : i32
    %c0_i32_0 = arith.constant 0 : i32
    %c0_i32_1 = arith.constant 0 : i32
    return %c0_i32, %c0_i32_0 : i32, i32
  }
  func.func @transform_4(%arg0: i32) -> (i32, i32) {
    %c0_i32 = arith.constant 0 : i32
    %c0_i32_0 = arith.constant 0 : i32
    %c0_i32_1 = arith.constant 0 : i32
    return %c0_i32, %c0_i32_0 : i32, i32
  }
  func.func @transform_5(%arg0: i32) -> (i32, i32) {
    %c0_i32 = arith.constant 0 : i32
    %c0_i32_0 = arith.constant 0 : i32
    %c0_i32_1 = arith.constant 0 : i32
    return %c0_i32, %c0_i32_0 : i32, i32
  }
  func.func @transform_6(%arg0: i32) -> (i32, i32) {
    %c0_i32 = arith.constant 0 : i32
    %c0_i32_0 = arith.constant 0 : i32
    %c0_i32_1 = arith.constant 0 : i32
    return %c0_i32, %c0_i32_0 : i32, i32
  }
  func.func @transform_7(%arg0: i32) -> (i32, i32) {
    %c0_i32 = arith.constant 0 : i32
    %c0_i32_0 = arith.constant 0 : i32
    %c0_i32_1 = arith.constant 0 : i32
    return %c0_i32, %c0_i32_0 : i32, i32
  }
  func.func @transform_8(%arg0: i32) -> (i32, i32) {
    %c0_i32 = arith.constant 0 : i32
    %c0_i32_0 = arith.constant 0 : i32
    %c0_i32_1 = arith.constant 0 : i32
    return %c0_i32, %c0_i32_0 : i32, i32
  }
  func.func @transform_9(%arg0: i32) -> (i32, i32) {
    %c0_i32 = arith.constant 0 : i32
    %c0_i32_0 = arith.constant 0 : i32
    return %arg0, %c0_i32 : i32, i32
  }
}

</mosaic_0001>

<llo_original>
// kernel: encoder_forward.1
$region0: #{encoder_forward.1}
  #allocation0 [shape = 'u32[]', space=smem, size = 0x4, offset = 0x4, fixed_abs, tag = 'smem constant byte address 0x4 - core index']
  #allocation1 [shape = 'u32[72,128]{1,0:T(1,128)}', space=vmem, size = 0x9000, scoped, tag = 'internal scratch']
  %s0 = inlined_call_operand.vmem [shape: f32[16,16], index: 0, kind: input, shape index: {}]
  %s1 = inlined_call_operand.vmem [shape: f32[16,32], index: 1, kind: input, shape index: {}]
  %s2 = inlined_call_operand.vmem [shape: f32[1,32], index: 2, kind: input, shape index: {}]
  %s3 = inlined_call_operand.vmem [shape: f32[32,32], index: 3, kind: input, shape index: {}]
  %s4 = inlined_call_operand.vmem [shape: f32[1,32], index: 4, kind: input, shape index: {}]
  %s5 = inlined_call_operand.vmem [shape: f32[32,64], index: 5, kind: input, shape index: {}]
  %s6 = inlined_call_operand.vmem [shape: f32[1,64], index: 6, kind: input, shape index: {}]
  %s7 = inlined_call_operand.vmem [shape: f32[64,16], index: 7, kind: input, shape index: {}]
  %s8 = inlined_call_operand.vmem [shape: f32[1,16], index: 8, kind: input, shape index: {}]
  %s9 = inlined_call_operand.vmem [shape: f32[16,16], index: 9, kind: output, shape index: {}]
  %s10 = sld [smem:[#allocation0]]
  $region46: #{encoder_forward.1} parent=0
    _
  %s12 = ssub.s32 1, %s10
  %s13 = scalar_select 0, %s12, %s10
  // Predicated region
  $region2: #{encoder_forward.1} parent=0 // pred_check
    _
  $region3: #{encoder_forward.1} parent=0 // pred_check_branch
    %15 = sbr.rel (0) target = $region5
  $region4: #{encoder_forward.1} parent=0 // pred_region
    _
  $region5: #{encoder_forward.1} parent=0 // pred_fallthru
    _
  // Predicated region
  $region6: #{encoder_forward.1} parent=0 // pred_check
    _
  $region7: #{encoder_forward.1} parent=0 // pred_check_branch
    %17 = sbr.rel (0) target = $region9
  $region8: #{encoder_forward.1} parent=0 // pred_region
    _
  $region9: #{encoder_forward.1} parent=0 // pred_fallthru
    _
  // Predicated region
  $region10: #{encoder_forward.1} parent=0 // pred_check
    _
  $region11: #{encoder_forward.1} parent=0 // pred_check_branch
    %19 = sbr.rel (0) target = $region13
  $region12: #{encoder_forward.1} parent=0 // pred_region
    _
  $region13: #{encoder_forward.1} parent=0 // pred_fallthru
    _
  // Predicated region
  $region14: #{encoder_forward.1} parent=0 // pred_check
    _
  $region15: #{encoder_forward.1} parent=0 // pred_check_branch
    %21 = sbr.rel (0) target = $region17
  $region16: #{encoder_forward.1} parent=0 // pred_region
    _
  $region17: #{encoder_forward.1} parent=0 // pred_fallthru
    _
  // Predicated region
  $region18: #{encoder_forward.1} parent=0 // pred_check
    _
  $region19: #{encoder_forward.1} parent=0 // pred_check_branch
    %23 = sbr.rel (0) target = $region21
  $region20: #{encoder_forward.1} parent=0 // pred_region
    _
  $region21: #{encoder_forward.1} parent=0 // pred_fallthru
    _
  // Predicated region
  $region22: #{encoder_forward.1} parent=0 // pred_check
    _
  $region23: #{encoder_forward.1} parent=0 // pred_check_branch
    %25 = sbr.rel (0) target = $region25
  $region24: #{encoder_forward.1} parent=0 // pred_region
    _
  $region25: #{encoder_forward.1} parent=0 // pred_fallthru
    _
  // Predicated region
  $region26: #{encoder_forward.1} parent=0 // pred_check
    _
  $region27: #{encoder_forward.1} parent=0 // pred_check_branch
    %27 = sbr.rel (0) target = $region29
  $region28: #{encoder_forward.1} parent=0 // pred_region
    _
  $region29: #{encoder_forward.1} parent=0 // pred_fallthru
    _
  // Predicated region
  $region30: #{encoder_forward.1} parent=0 // pred_check
    _
  $region31: #{encoder_forward.1} parent=0 // pred_check_branch
    %29 = sbr.rel (0) target = $region33
  $region32: #{encoder_forward.1} parent=0 // pred_region
    _
  $region33: #{encoder_forward.1} parent=0 // pred_fallthru
    _
  // Predicated region
  $region34: #{encoder_forward.1} parent=0 // pred_check
    _
  $region35: #{encoder_forward.1} parent=0 // pred_check_branch
    %31 = sbr.rel (0) target = $region37
  $region36: #{encoder_forward.1} parent=0 // pred_region
    _
  $region37: #{encoder_forward.1} parent=0 // pred_fallthru
    _
  %v32 = vld [vmem:[%s0] sm:$0xff]
  %v33 = vld [vmem:[%s0 + $0x8] sm:$0xff]
  %v34 = vld [vmem:[%s1] sm:$0xff]
  %v35 = vld [vmem:[%s1 + $0x8] sm:$0xff]
  %v36 = vld [vmem:[%s2] sm:$0x1]
  %v38 = vperm.slane %v36, 0
  %vm40 = vcmask 130048
  %v42 = vsel %vm40, %v32, 0
  %v45 = vsel %vm40, %v33, 0
  %47 = vmatpush.msra.mxu0 0.0
  %48 = vmatpush.msra.mxu0 0.0
  %49 = vmatpush.msra.mxu0 0.0
  %50 = vmatpush.msra.mxu0 0.0
  %51 = vmatpush.msra.mxu0 0.0
  %52 = vmatpush.msra.mxu0 0.0
  %53 = vmatpush.msra.mxu0 0.0
  %54 = vmatpush.msra.mxu0 0.0
  %55 = vmatpush.msra.mxu0 0.0
  %56 = vmatpush.msra.mxu0 0.0
  %57 = vmatpush.msra.mxu0 0.0
  %58 = vmatpush.msra.mxu0 0.0
  %59 = vmatpush.msra.mxu0 0.0
  %60 = vmatpush.msra.mxu0 0.0
  %61 = vmatpush.msra.mxu0 %v35
  %62 = vmatpush.msra.mxu0 %v34
  %63 = vmatmul.f32.gmra.mxu0 %v42
  %v64 = vpop.f32.mrf.mxu0
  %v65 = vadd.f32 %v38, %v64
  %66 = vmatmul.f32.gmra.mxu0 %v45
  %v67 = vpop.f32.mrf.mxu0
  %v68 = vadd.f32 %v38, %v67
  %69 = vdwg.mxu0
  %v70 = vmax.f32 %v65, 0.0
  %v71 = vmax.f32 %v68, 0.0
  %v72 = vld [vmem:[%s3] sm:$0xff]
  %v73 = vld [vmem:[%s3 + $0x8] sm:$0xff]
  %v74 = vld [vmem:[%s3 + $0x10] sm:$0xff]
  %v75 = vld [vmem:[%s3 + $0x18] sm:$0xff]
  %v76 = vld [vmem:[%s4] sm:$0x1]
  %v78 = vperm.slane %v76, 0
  %vm80 = vcmask 261120
  %v82 = vsel %vm80, %v70, 0
  %v85 = vsel %vm80, %v71, 0
  %87 = vmatpush.msra.mxu0 0.0
  %88 = vmatpush.msra.mxu0 0.0
  %89 = vmatpush.msra.mxu0 0.0
  %90 = vmatpush.msra.mxu0 0.0
  %91 = vmatpush.msra.mxu0 0.0
  %92 = vmatpush.msra.mxu0 0.0
  %93 = vmatpush.msra.mxu0 0.0
  %94 = vmatpush.msra.mxu0 0.0
  %95 = vmatpush.msra.mxu0 0.0
  %96 = vmatpush.msra.mxu0 0.0
  %97 = vmatpush.msra.mxu0 0.0
  %98 = vmatpush.msra.mxu0 0.0
  %99 = vmatpush.msra.mxu0 %v75
  %100 = vmatpush.msra.mxu0 %v74
  %101 = vmatpush.msra.mxu0 %v73
  %102 = vmatpush.msra.mxu0 %v72
  %103 = vmatmul.f32.gmra.mxu0 %v82
  %v104 = vpop.f32.mrf.mxu0
  %v105 = vadd.f32 %v78, %v104
  %106 = vmatmul.f32.gmra.mxu0 %v85
  %v107 = vpop.f32.mrf.mxu0
  %v108 = vadd.f32 %v78, %v107
  %109 = vdwg.mxu0
  %v110 = vmax.f32 %v105, 0.0
  %v111 = vmax.f32 %v108, 0.0
  %v112 = vld [vmem:[%s5] sm:$0xff]
  %v113 = vld [vmem:[%s5 + $0x8] sm:$0xff]
  %v114 = vld [vmem:[%s5 + $0x10] sm:$0xff]
  %v115 = vld [vmem:[%s5 + $0x18] sm:$0xff]
  %v116 = vld [vmem:[%s6] sm:$0x1]
  %v118 = vperm.slane %v116, 0
  %v121 = vsel %vm80, %v110, 0
  %v124 = vsel %vm80, %v111, 0
  %126 = vmatpush.msra.mxu0 0.0
  %127 = vmatpush.msra.mxu0 0.0
  %128 = vmatpush.msra.mxu0 0.0
  %129 = vmatpush.msra.mxu0 0.0
  %130 = vmatpush.msra.mxu0 0.0
  %131 = vmatpush.msra.mxu0 0.0
  %132 = vmatpush.msra.mxu0 0.0
  %133 = vmatpush.msra.mxu0 0.0
  %134 = vmatpush.msra.mxu0 0.0
  %135 = vmatpush.msra.mxu0 0.0
  %136 = vmatpush.msra.mxu0 0.0
  %137 = vmatpush.msra.mxu0 0.0
  %138 = vmatpush.msra.mxu0 %v115
  %139 = vmatpush.msra.mxu0 %v114
  %140 = vmatpush.msra.mxu0 %v113
  %141 = vmatpush.msra.mxu0 %v112
  %142 = vmatmul.f32.gmra.mxu0 %v121
  %v143 = vpop.f32.mrf.mxu0
  %v144 = vadd.f32 %v118, %v143
  %145 = vmatmul.f32.gmra.mxu0 %v124
  %v146 = vpop.f32.mrf.mxu0
  %v147 = vadd.f32 %v118, %v146
  %148 = vdwg.mxu0
  %v149 = vmax.f32 %v144, 0.0
  %v150 = vmax.f32 %v147, 0.0
  %v151 = vld [vmem:[%s7] sm:$0xff]
  %v152 = vld [vmem:[%s7 + $0x8] sm:$0xff]
  %v153 = vld [vmem:[%s7 + $0x10] sm:$0xff]
  %v154 = vld [vmem:[%s7 + $0x18] sm:$0xff]
  %v155 = vld [vmem:[%s7 + $0x20] sm:$0xff]
  %v156 = vld [vmem:[%s7 + $0x28] sm:$0xff]
  %v157 = vld [vmem:[%s7 + $0x30] sm:$0xff]
  %v158 = vld [vmem:[%s7 + $0x38] sm:$0xff]
  %v159 = vld [vmem:[%s8] sm:$0x1]
  %v161 = vperm.slane %v159, 0
  %vm163 = vcmask 523264
  %v165 = vsel %vm163, %v149, 0
  %v168 = vsel %vm163, %v150, 0
  %170 = vmatpush.msra.mxu0 0.0
  %171 = vmatpush.msra.mxu0 0.0
  %172 = vmatpush.msra.mxu0 0.0
  %173 = vmatpush.msra.mxu0 0.0
  %174 = vmatpush.msra.mxu0 0.0
  %175 = vmatpush.msra.mxu0 0.0
  %176 = vmatpush.msra.mxu0 0.0
  %177 = vmatpush.msra.mxu0 0.0
  %178 = vmatpush.msra.mxu0 %v158
  %179 = vmatpush.msra.mxu0 %v157
  %180 = vmatpush.msra.mxu0 %v156
  %181 = vmatpush.msra.mxu0 %v155
  %182 = vmatpush.msra.mxu0 %v154
  %183 = vmatpush.msra.mxu0 %v153
  %184 = vmatpush.msra.mxu0 %v152
  %185 = vmatpush.msra.mxu0 %v151
  %186 = vmatmul.f32.gmra.mxu0 %v165
  %v187 = vpop.f32.mrf.mxu0
  %v188 = vadd.f32 %v161, %v187
  %189 = vmatmul.f32.gmra.mxu0 %v168
  %v190 = vpop.f32.mrf.mxu0
  %v191 = vadd.f32 %v161, %v190
  %192 = vdwg.mxu0
  %193 = vst.msk [vmem:[%s9] sm:$0xff] %vm40, %v188
  %194 = vst.msk [vmem:[%s9 + $0x8] sm:$0xff] %vm40, %v191
  // Predicated region
  $region38: #{encoder_forward.1} parent=0 // pred_check
    _
  $region39: #{encoder_forward.1} parent=0 // pred_check_branch
    %196 = sbr.rel (0) target = $region41
  $region40: #{encoder_forward.1} parent=0 // pred_region
    _
  $region41: #{encoder_forward.1} parent=0 // pred_fallthru
    _
  // Predicated region
  $region42: #{encoder_forward.1} parent=0 // pred_check
    _
  $region43: #{encoder_forward.1} parent=0 // pred_check_branch
    %198 = sbr.rel (0) target = $region45
  $region44: #{encoder_forward.1} parent=0 // pred_region
    _
  $region45: #{encoder_forward.1} parent=0 // pred_fallthru
    _

</llo_original>
